<compile_context>
chip_gen: v7x
topology: tpu7x:2x2x1
jax: 0.10.0
libtpu: 0.0.40
codegen_flags: <defaults>
</compile_context>

<pallas_src>
import jax
import jax.numpy as jnp
from jax.experimental import pallas as pl
from jax.experimental.pallas import tpu as pltpu


def _round_up(n, m):
    return ((n + m - 1) // m) * m


def _cdiv(a, b):
    return -(-a // b)


def _sigmoid(h):
    # EUP exp + EUP approx reciprocal; keeps the VALU slots free for bias-add
    # and cast work.  h is f32.
    return pl.reciprocal(1.0 + jnp.exp(-h), approx=True)


def _mlp_kernel(x_ref,
                w1_ref, b1_ref,
                w2_ref, b2_ref,
                w3_ref, b3_ref,
                w4_ref, b4_ref,
                o_ref):
    """Fused 4-layer MLP, all layers resident in VMEM.

    Matmuls run at the weight dtype (f32 or bf16) with f32 accumulation via
    preferred_element_type; bias-add and activations stay in f32 (v5e has no
    bf16 VALU/EUP).  All hidden/output widths are padded to multiples of 128
    lanes by the wrapper, so every intermediate and the final store are
    lane-dense.
    """
    wdt = w1_ref.dtype
    x = x_ref[...].astype(wdt)

    h1 = jnp.dot(x, w1_ref[...], preferred_element_type=jnp.float32) + b1_ref[...]
    h1 = _sigmoid(h1)

    h2 = jnp.dot(h1.astype(wdt), w2_ref[...],
                 preferred_element_type=jnp.float32) + b2_ref[...]
    h2 = jnp.maximum(h2, 0.0)

    h3 = jnp.dot(h2.astype(wdt), w3_ref[...],
                 preferred_element_type=jnp.float32) + b3_ref[...]
    h3 = jnp.maximum(h3, 0.0)

    h4 = jnp.dot(h3.astype(wdt), w4_ref[...],
                 preferred_element_type=jnp.float32) + b4_ref[...]
    o_ref[...] = _sigmoid(h4).astype(o_ref.dtype)


def _choose_batch_tile(B, block_b):
    """Sublane-aligned batch tile.

    Single step when the batch fits in one tile; otherwise balanced tiles, and
    for large batches at least 4 grid steps so each v7x TensorCore gets >=2
    pipelined steps under dimension_semantics=('parallel',).
    """
    if B <= block_b:
        return B
    steps = _cdiv(B, block_b)
    if B >= 4 * 128:
        steps = max(steps, 4)
    bb = _round_up(_cdiv(B, steps), 8)
    return min(bb, B)


def mlp_forward(x, params, *, block_b=1024, use_bf16=True, trim_output=True):
    """x: [B, ndim] float32. params: dict of (W, b) per layer, W: [in, out], b: [1, out].

    use_bf16: cast x / weights to bf16 for the MXU (all TPU generations are
    bf16-MXU native); accumulation, bias-add and activations remain f32.
    trim_output: slice the lane-padded [B, round_up(nclass,128)] kernel output
    back to [B, nclass] (set False to skip the extra XLA copy and let the
    consumer fuse the slice).
    """
    B, ndim = x.shape
    w1, b1 = params["w1"], params["b1"]
    w2, b2 = params["w2"], params["b2"]
    w3, b3 = params["w3"], params["b3"]
    w4, b4 = params["w4"], params["b4"]
    nclass = w4.shape[1]

    # ---- lane-dense hidden layer 1: pad the 64-wide layer to 128 columns.
    # Padded h1 columns compute sigmoid(0)=0.5 but multiply zero rows of the
    # padded w2, contributing nothing downstream.
    h1_pad = _round_up(max(w1.shape[1], 128), 128)
    if h1_pad != w1.shape[1]:
        extra = h1_pad - w1.shape[1]
        w1 = jnp.pad(w1, ((0, 0), (0, extra)))
        b1 = jnp.pad(b1, ((0, 0), (0, extra)))
        w2 = jnp.pad(w2, ((0, extra), (0, 0)))

    # ---- lane-dense output: pad the last layer to a multiple of 128 columns.
    # Padded columns compute sigmoid(0)=0.5 and are (optionally) sliced off; the
    # first `nclass` columns are identical to the unpadded computation.
    n_pad = _round_up(max(nclass, 128), 128)
    if n_pad != nclass:
        w4 = jnp.pad(w4, ((0, 0), (0, n_pad - nclass)))
        b4 = jnp.pad(b4, ((0, 0), (0, n_pad - nclass)))

    # ---- bf16 MXU operands (f32 accumulation / activations in-kernel).
    if use_bf16:
        x = x.astype(jnp.bfloat16)
        w1, w2, w3, w4 = (w.astype(jnp.bfloat16) for w in (w1, w2, w3, w4))

    # ---- batch tile selection (amortize per-step overhead, balance megacore).
    bb = _choose_batch_tile(B, block_b)
    grid = (pl.cdiv(B, bb),)

    # ---- cost estimate derived from actual (padded) shapes / dtypes.
    in_itemsize = jnp.dtype(x.dtype).itemsize
    out_itemsize = 4  # f32 output
    weight_bytes = sum(int(a.size) * jnp.dtype(a.dtype).itemsize
                       for a in (w1, b1, w2, b2, w3, b3, w4, b4))
    flops = 2 * B * sum(w.shape[0] * w.shape[1] for w in (w1, w2, w3, w4))
    transcendentals = 2 * B * (w1.shape[1] + n_pad)  # exp + approx recip, 2 sigmoid layers
    cost = pl.CostEstimate(
        flops=flops,
        transcendentals=transcendentals,
        bytes_accessed=B * ndim * in_itemsize + B * n_pad * out_itemsize + weight_bytes,
    )

    # ---- VMEM budget: only raise the scoped limit when a big tile needs it,
    # and never above v7x's 64 MiB physical VMEM.
    est_vmem = (2 * bb * ndim * in_itemsize            # x (double-buffered)
                + 2 * bb * n_pad * out_itemsize        # out (double-buffered)
                + 2 * weight_bytes                     # resident weights (conservative)
                + 4 * bb * (w1.shape[1] + w2.shape[1] + w3.shape[1] + n_pad) * 4)
    cp_kwargs = dict(dimension_semantics=("parallel",))
    if est_vmem > (28 << 20):
        cp_kwargs["vmem_limit_bytes"] = min(_round_up(est_vmem + (4 << 20), 1 << 20),
                                            64 << 20)

    # Weights/biases are resident: full-extent block, constant index_map, so
    # their DMAs are issued once and never re-fetched across batch tiles.
    def full(a):
        return pl.BlockSpec(a.shape, lambda i: (0, 0))

    out = pl.pallas_call(
        _mlp_kernel,
        out_shape=jax.ShapeDtypeStruct((B, n_pad), jnp.float32),
        grid_spec=pltpu.PrefetchScalarGridSpec(
            num_scalar_prefetch=0,
            grid=grid,
            in_specs=[
                pl.BlockSpec((bb, ndim), lambda i: (i, 0)),
                full(w1), full(b1),
                full(w2), full(b2),
                full(w3), full(b3),
                full(w4), full(b4),
            ],
            out_specs=pl.BlockSpec((bb, n_pad), lambda i: (i, 0)),
        ),
        compiler_params=pltpu.CompilerParams(**cp_kwargs),
        cost_estimate=cost,
    )(x, w1, b1, w2, b2, w3, b3, w4, b4)

    if trim_output and n_pad != nclass:
        return out[:, :nclass]
    return out


def init_params(key, ndim, nclass):
    """Deterministic init mimicking torch.nn.Linear default (uniform +-1/sqrt(fan_in))."""
    dims = [ndim, 64, 128, 256, nclass]
    params = {}
    for li in range(4):
        fan_in, fan_out = dims[li], dims[li + 1]
        key, kw, kb = jax.random.split(key, 3)
        bound = 1.0 / jnp.sqrt(fan_in)
        # stored as [in, out] (transpose of torch's [out, in]) for y = x @ W
        params[f"w{li + 1}"] = jax.random.uniform(
            kw, (fan_in, fan_out), jnp.float32, -bound, bound)
        params[f"b{li + 1}"] = jax.random.uniform(
            kb, (1, fan_out), jnp.float32, -bound, bound)
    return params


def mlp_reference(x, params):
    """Pure-JAX reference for correctness check."""
    h = jax.nn.sigmoid(x @ params["w1"] + params["b1"])
    h = jnp.maximum(h @ params["w2"] + params["b2"], 0.0)
    h = jnp.maximum(h @ params["w3"] + params["b3"], 0.0)
    return jax.nn.sigmoid(h @ params["w4"] + params["b4"])


if __name__ == "__main__":
    key = jax.random.PRNGKey(0)
    ndim, nclass, batch = 32, 10, 8

    kx, kp = jax.random.split(key)
    x = jax.random.normal(kx, (batch, ndim), jnp.float32)
    params = init_params(kp, ndim, nclass)

    ref = mlp_reference(x, params)

    # f32 MXU path (exact matmuls; sigmoid uses EUP approx reciprocal).
    out_f32 = jax.block_until_ready(mlp_forward(x, params, use_bf16=False))
    assert out_f32.shape == (batch, nclass), out_f32.shape
    assert jnp.allclose(out_f32, ref, atol=1e-2, rtol=1e-2), \
        float(jnp.max(jnp.abs(out_f32 - ref)))

    # Default path: bf16 MXU operands, f32 accumulation / activations.
    out = jax.block_until_ready(mlp_forward(x, params))
    assert out.shape == (batch, nclass), out.shape
    assert jnp.allclose(out, ref, atol=5e-2, rtol=5e-2), \
        float(jnp.max(jnp.abs(out - ref)))

    # Untrimmed (lane-padded) output path: first nclass columns must match.
    out_pad = jax.block_until_ready(mlp_forward(x, params, trim_output=False))
    assert out_pad.shape[1] % 128 == 0, out_pad.shape
    assert jnp.allclose(out_pad[:, :nclass], out, atol=0, rtol=0)

    print("KERNEL_OK")
</pallas_src>

<mosaic_0001>
module attributes {stable_mosaic.version = 11 : i64} {
  func.func @_mlp_kernel(%arg0: i32, %arg1: memref<8x32xf32, #tpu.memory_space<vmem>>, %arg2: memref<32x128xf32, #tpu.memory_space<vmem>>, %arg3: memref<1x128xf32, #tpu.memory_space<vmem>>, %arg4: memref<128x128xf32, #tpu.memory_space<vmem>>, %arg5: memref<1x128xf32, #tpu.memory_space<vmem>>, %arg6: memref<128x256xf32, #tpu.memory_space<vmem>>, %arg7: memref<1x256xf32, #tpu.memory_space<vmem>>, %arg8: memref<256x128xf32, #tpu.memory_space<vmem>>, %arg9: memref<1x128xf32, #tpu.memory_space<vmem>>, %arg10: memref<8x128xf32, #tpu.memory_space<vmem>>) attributes {dimension_semantics = [#tpu.dimension_semantics<parallel>], iteration_bounds = array<i64: 1>, scalar_prefetch = 0 : i64, scratch_operands = 0 : i64, tpu.core_type = #tpu.core_type<tc>, window_params = [{transform_indices = @transform_0, window_bounds = array<i64: 8, 32>}, {pipeline_mode = #tpu.pipeline_mode<synchronous>, transform_indices = @transform_1, window_bounds = array<i64: 32, 128>}, {pipeline_mode = #tpu.pipeline_mode<synchronous>, transform_indices = @transform_2, window_bounds = array<i64: 1, 128>}, {pipeline_mode = #tpu.pipeline_mode<synchronous>, transform_indices = @transform_3, window_bounds = array<i64: 128, 128>}, {pipeline_mode = #tpu.pipeline_mode<synchronous>, transform_indices = @transform_4, window_bounds = array<i64: 1, 128>}, {pipeline_mode = #tpu.pipeline_mode<synchronous>, transform_indices = @transform_5, window_bounds = array<i64: 128, 256>}, {pipeline_mode = #tpu.pipeline_mode<synchronous>, transform_indices = @transform_6, window_bounds = array<i64: 1, 256>}, {pipeline_mode = #tpu.pipeline_mode<synchronous>, transform_indices = @transform_7, window_bounds = array<i64: 256, 128>}, {pipeline_mode = #tpu.pipeline_mode<synchronous>, transform_indices = @transform_8, window_bounds = array<i64: 1, 128>}, {transform_indices = @transform_9, window_bounds = array<i64: 8, 128>}]} {
    %c0 = arith.constant 0 : index
    %c0_0 = arith.constant 0 : index
    %0 = vector.load %arg1[%c0, %c0_0] : memref<8x32xf32, #tpu.memory_space<vmem>>, vector<8x32xf32>
    %c0_1 = arith.constant 0 : index
    %c0_2 = arith.constant 0 : index
    %1 = vector.load %arg2[%c0_1, %c0_2] : memref<32x128xf32, #tpu.memory_space<vmem>>, vector<32x128xf32>
    %cst = arith.constant dense<0.000000e+00> : vector<8x128xf32>
    %2 = tpu.matmul %0, %1, %cst {dimension_numbers = #tpu.dot_dimension_numbers<[1], [0], [0], [1], [0, 0, 1, 1], [], []>} : vector<8x32xf32>, vector<32x128xf32>, vector<8x128xf32> -> vector<8x128xf32>
    %c0_3 = arith.constant 0 : index
    %c0_4 = arith.constant 0 : index
    %3 = vector.load %arg3[%c0_3, %c0_4] : memref<1x128xf32, #tpu.memory_space<vmem>>, vector<1x128xf32>
    %4 = vector.broadcast %3 : vector<1x128xf32> to vector<8x128xf32>
    %5 = arith.addf %2, %4 : vector<8x128xf32>
    %cst_5 = arith.constant 0.000000e+00 : f32
    %6 = vector.broadcast %cst_5 : f32 to vector<8x128xf32>
    %7 = arith.subf %6, %5 : vector<8x128xf32>
    %8 = math.exp %7 : vector<8x128xf32>
    %cst_6 = arith.constant 1.000000e+00 : f32
    %9 = vector.broadcast %cst_6 : f32 to vector<8x128xf32>
    %10 = arith.addf %9, %8 : vector<8x128xf32>
    %11 = tpu.reciprocal %10 {approx = true} : vector<8x128xf32> -> vector<8x128xf32>
    %c0_7 = arith.constant 0 : index
    %c0_8 = arith.constant 0 : index
    %12 = vector.load %arg4[%c0_7, %c0_8] : memref<128x128xf32, #tpu.memory_space<vmem>>, vector<128x128xf32>
    %cst_9 = arith.constant dense<0.000000e+00> : vector<8x128xf32>
    %13 = tpu.matmul %11, %12, %cst_9 {dimension_numbers = #tpu.dot_dimension_numbers<[1], [0], [0], [1], [0, 0, 1, 1], [], []>} : vector<8x128xf32>, vector<128x128xf32>, vector<8x128xf32> -> vector<8x128xf32>
    %c0_10 = arith.constant 0 : index
    %c0_11 = arith.constant 0 : index
    %14 = vector.load %arg5[%c0_10, %c0_11] : memref<1x128xf32, #tpu.memory_space<vmem>>, vector<1x128xf32>
    %15 = vector.broadcast %14 : vector<1x128xf32> to vector<8x128xf32>
    %16 = arith.addf %13, %15 : vector<8x128xf32>
    %cst_12 = arith.constant 0.000000e+00 : f32
    %17 = vector.broadcast %cst_12 : f32 to vector<8x128xf32>
    %18 = arith.maximumf %16, %17 : vector<8x128xf32>
    %c0_13 = arith.constant 0 : index
    %c0_14 = arith.constant 0 : index
    %19 = vector.load %arg6[%c0_13, %c0_14] : memref<128x256xf32, #tpu.memory_space<vmem>>, vector<128x256xf32>
    %cst_15 = arith.constant dense<0.000000e+00> : vector<8x256xf32>
    %20 = tpu.matmul %18, %19, %cst_15 {dimension_numbers = #tpu.dot_dimension_numbers<[1], [0], [0], [1], [0, 0, 1, 1], [], []>} : vector<8x128xf32>, vector<128x256xf32>, vector<8x256xf32> -> vector<8x256xf32>
    %c0_16 = arith.constant 0 : index
    %c0_17 = arith.constant 0 : index
    %21 = vector.load %arg7[%c0_16, %c0_17] : memref<1x256xf32, #tpu.memory_space<vmem>>, vector<1x256xf32>
    %22 = vector.broadcast %21 : vector<1x256xf32> to vector<8x256xf32>
    %23 = arith.addf %20, %22 : vector<8x256xf32>
    %cst_18 = arith.constant 0.000000e+00 : f32
    %24 = vector.broadcast %cst_18 : f32 to vector<8x256xf32>
    %25 = arith.maximumf %23, %24 : vector<8x256xf32>
    %c0_19 = arith.constant 0 : index
    %c0_20 = arith.constant 0 : index
    %26 = vector.load %arg8[%c0_19, %c0_20] : memref<256x128xf32, #tpu.memory_space<vmem>>, vector<256x128xf32>
    %cst_21 = arith.constant dense<0.000000e+00> : vector<8x128xf32>
    %27 = tpu.matmul %25, %26, %cst_21 {dimension_numbers = #tpu.dot_dimension_numbers<[1], [0], [0], [1], [0, 0, 1, 1], [], []>} : vector<8x256xf32>, vector<256x128xf32>, vector<8x128xf32> -> vector<8x128xf32>
    %c0_22 = arith.constant 0 : index
    %c0_23 = arith.constant 0 : index
    %28 = vector.load %arg9[%c0_22, %c0_23] : memref<1x128xf32, #tpu.memory_space<vmem>>, vector<1x128xf32>
    %29 = vector.broadcast %28 : vector<1x128xf32> to vector<8x128xf32>
    %30 = arith.addf %27, %29 : vector<8x128xf32>
    %cst_24 = arith.constant 0.000000e+00 : f32
    %31 = vector.broadcast %cst_24 : f32 to vector<8x128xf32>
    %32 = arith.subf %31, %30 : vector<8x128xf32>
    %33 = math.exp %32 : vector<8x128xf32>
    %cst_25 = arith.constant 1.000000e+00 : f32
    %34 = vector.broadcast %cst_25 : f32 to vector<8x128xf32>
    %35 = arith.addf %34, %33 : vector<8x128xf32>
    %36 = tpu.reciprocal %35 {approx = true} : vector<8x128xf32> -> vector<8x128xf32>
    %c0_26 = arith.constant 0 : index
    %c0_27 = arith.constant 0 : index
    %37 = vector.load %arg10[%c0_26, %c0_27] : memref<8x128xf32, #tpu.memory_space<vmem>>, vector<8x128xf32>
    tpu.vector_store %arg10[%c0_26, %c0_27], %36 {strides = array<i32>} : memref<8x128xf32, #tpu.memory_space<vmem>>, vector<8x128xf32>,
    return
  }
  func.func @transform_0(%arg0: i32) -> (i32, i32) {
    %c0_i32 = arith.constant 0 : i32
    %c0_i32_0 = arith.constant 0 : i32
    return %arg0, %c0_i32 : i32, i32
  }
  func.func @transform_1(%arg0: i32) -> (i32, i32) {
    %c0_i32 = arith.constant 0 : i32
    %c0_i32_0 = arith.constant 0 : i32
    %c0_i32_1 = arith.constant 0 : i32
    return %c0_i32, %c0_i32_0 : i32, i32
  }
  func.func @transform_2(%arg0: i32) -> (i32, i32) {
    %c0_i32 = arith.constant 0 : i32
    %c0_i32_0 = arith.constant 0 : i32
    %c0_i32_1 = arith.constant 0 : i32
    return %c0_i32, %c0_i32_0 : i32, i32
  }
  func.func @transform_3(%arg0: i32) -> (i32, i32) {
    %c0_i32 = arith.constant 0 : i32
    %c0_i32_0 = arith.constant 0 : i32
    %c0_i32_1 = arith.constant 0 : i32
    return %c0_i32, %c0_i32_0 : i32, i32
  }
  func.func @transform_4(%arg0: i32) -> (i32, i32) {
    %c0_i32 = arith.constant 0 : i32
    %c0_i32_0 = arith.constant 0 : i32
    %c0_i32_1 = arith.constant 0 : i32
    return %c0_i32, %c0_i32_0 : i32, i32
  }
  func.func @transform_5(%arg0: i32) -> (i32, i32) {
    %c0_i32 = arith.constant 0 : i32
    %c0_i32_0 = arith.constant 0 : i32
    %c0_i32_1 = arith.constant 0 : i32
    return %c0_i32, %c0_i32_0 : i32, i32
  }
  func.func @transform_6(%arg0: i32) -> (i32, i32) {
    %c0_i32 = arith.constant 0 : i32
    %c0_i32_0 = arith.constant 0 : i32
    %c0_i32_1 = arith.constant 0 : i32
    return %c0_i32, %c0_i32_0 : i32, i32
  }
  func.func @transform_7(%arg0: i32) -> (i32, i32) {
    %c0_i32 = arith.constant 0 : i32
    %c0_i32_0 = arith.constant 0 : i32
    %c0_i32_1 = arith.constant 0 : i32
    return %c0_i32, %c0_i32_0 : i32, i32
  }
  func.func @transform_8(%arg0: i32) -> (i32, i32) {
    %c0_i32 = arith.constant 0 : i32
    %c0_i32_0 = arith.constant 0 : i32
    %c0_i32_1 = arith.constant 0 : i32
    return %c0_i32, %c0_i32_0 : i32, i32
  }
  func.func @transform_9(%arg0: i32) -> (i32, i32) {
    %c0_i32 = arith.constant 0 : i32
    %c0_i32_0 = arith.constant 0 : i32
    return %arg0, %c0_i32 : i32, i32
  }
}

</mosaic_0001>

<llo_original>
// kernel: tpu_custom_call.1
$region0: #{tpu_custom_call.1}
  #allocation0 [shape = 'u32[]', space=smem, size = 0x4, offset = 0x4, fixed_abs, tag = 'smem constant byte address 0x4 - core index']
  #allocation1 [shape = 'u32[144,128]{1,0:T(1,128)}', space=vmem, size = 0x12000, scoped, tag = 'internal scratch']
  %s0 = inlined_call_operand.hbm [shape: f32[8,32], index: 0, kind: input, shape index: {}]
  %s1 = inlined_call_operand.hbm [shape: f32[32,128], index: 1, kind: input, shape index: {}]
  %s2 = inlined_call_operand.vmem [shape: f32[1,128], index: 2, kind: input, shape index: {}]
  %s3 = inlined_call_operand.hbm [shape: f32[128,128], index: 3, kind: input, shape index: {}]
  %s4 = inlined_call_operand.vmem [shape: f32[1,128], index: 4, kind: input, shape index: {}]
  %s5 = inlined_call_operand.hbm [shape: f32[128,256], index: 5, kind: input, shape index: {}]
  %s6 = inlined_call_operand.vmem [shape: f32[1,256], index: 6, kind: input, shape index: {}]
  %s7 = inlined_call_operand.hbm [shape: f32[256,128], index: 7, kind: input, shape index: {}]
  %s8 = inlined_call_operand.vmem [shape: f32[1,128], index: 8, kind: input, shape index: {}]
  %s9 = inlined_call_operand.hbm [shape: f32[8,128], index: 9, kind: output, shape index: {}]
  %s10 = sld [smem:[#allocation0]]
  $region66: #{tpu_custom_call.1} parent=0
    _
  %s12 = ssub.s32 1, %s10
  %s13 = scalar_select 0, %s12, %s10
  $region1: #{tpu_custom_call.1} parent=0
    #allocation2 [shape = 'u8[4096]{0}', space=vmem, size = 0x1000, scoped, tag = 'input window, operand 0, single buffered']
    #allocation3 [shape = 's32[1]{0}', space=sflag, size = 0x4, scoped, tag = 'scoped memory for tpu_custom_call.1']
    #allocation4 [shape = 's32[1]{0}', space=sflag, size = 0x4, scoped, tag = 'scoped memory for tpu_custom_call.1']
    #allocation5 [shape = 'u8[16384]{0}', space=vmem, size = 0x4000, scoped, tag = 'input window, operand 1, single buffered']
    #allocation6 [shape = 's32[1]{0}', space=sflag, size = 0x4, scoped, tag = 'scoped memory for tpu_custom_call.1']
    #allocation7 [shape = 'u8[65536]{0}', space=vmem, size = 0x10000, scoped, tag = 'input window, operand 3, single buffered']
    #allocation8 [shape = 'u8[131072]{0}', space=vmem, size = 0x20000, scoped, tag = 'input window, operand 5, single buffered']
    #allocation9 [shape = 's32[1]{0}', space=sflag, size = 0x4, scoped, tag = 'scoped memory for tpu_custom_call.1']
    #allocation10 [shape = 'u8[131072]{0}', space=vmem, size = 0x20000, scoped, tag = 'input window, operand 7, single buffered']
    #allocation11 [shape = 'u8[4096]{0}', space=vmem, size = 0x1000, scoped, tag = 'output window, operand 0, single buffered']
    %14 = vsyncpa [#allocation3], 0
    %15 = vsyncpa [#allocation6], 0
    %16 = vsyncpa [#allocation9], 0
    %17 = vsyncpa [#allocation4], 0
    // Predicated region
    $region2: #{tpu_custom_call.1} parent=1 // pred_check
      _
    $region3: #{tpu_custom_call.1} parent=1 // pred_check_branch
      %19 = sbr.rel (0) target = $region5
    $region4: #{tpu_custom_call.1} parent=1 // pred_region
      %s21 = ssub.s32 128, 128
      %22 = vsyncadd [#allocation3], %s21
      %s24 = sshll.u32 [#allocation2], 4
      %s25 = int_to_ptr.vmem [resolvable:$true] %s24
      %27 = dma.hbm_to_vmem [thread:$0]  %s0, 128, %s25, [#allocation3]
    $region5: #{tpu_custom_call.1} parent=1 // pred_fallthru
      _
    // Predicated region
    $region6: #{tpu_custom_call.1} parent=1 // pred_check
      _
    $region7: #{tpu_custom_call.1} parent=1 // pred_check_branch
      %29 = sbr.rel (0) target = $region9
    $region8: #{tpu_custom_call.1} parent=1 // pred_region
      %s31 = ssub.s32 512, 512
      %32 = vsyncadd [#allocation6], %s31
      %s33 = sshll.u32 [#allocation5], 4
      %s34 = int_to_ptr.vmem [resolvable:$true] %s33
      %39 = dma.hbm_to_vmem [thread:$0]  %s1, 512, %s34, [#allocation6], 128, 128, 8
    $region9: #{tpu_custom_call.1} parent=1 // pred_fallthru
      _
    // Predicated region
    $region10: #{tpu_custom_call.1} parent=1 // pred_check
      _
    $region11: #{tpu_custom_call.1} parent=1 // pred_check_branch
      %41 = sbr.rel (0) target = $region13
    $region12: #{tpu_custom_call.1} parent=1 // pred_region
      _
    $region13: #{tpu_custom_call.1} parent=1 // pred_fallthru
      _
    // Predicated region
    $region14: #{tpu_custom_call.1} parent=1 // pred_check
      _
    $region15: #{tpu_custom_call.1} parent=1 // pred_check_branch
      %43 = sbr.rel (0) target = $region17
    $region16: #{tpu_custom_call.1} parent=1 // pred_region
      %s45 = ssub.s32 2048, 2048
      %46 = vsyncadd [#allocation6], %s45
      %s47 = sshll.u32 [#allocation7], 4
      %s48 = int_to_ptr.vmem [resolvable:$true] %s47
      %53 = dma.hbm_to_vmem [thread:$0]  %s3, 2048, %s48, [#allocation6], 128, 128, 8
    $region17: #{tpu_custom_call.1} parent=1 // pred_fallthru
      _
    // Predicated region
    $region18: #{tpu_custom_call.1} parent=1 // pred_check
      _
    $region19: #{tpu_custom_call.1} parent=1 // pred_check_branch
      %55 = sbr.rel (0) target = $region21
    $region20: #{tpu_custom_call.1} parent=1 // pred_region
      _
    $region21: #{tpu_custom_call.1} parent=1 // pred_fallthru
      _
    // Predicated region
    $region22: #{tpu_custom_call.1} parent=1 // pred_check
      _
    $region23: #{tpu_custom_call.1} parent=1 // pred_check_branch
      %57 = sbr.rel (0) target = $region25
    $region24: #{tpu_custom_call.1} parent=1 // pred_region
      %s59 = ssub.s32 4096, 4096
      %60 = vsyncadd [#allocation9], %s59
      %s61 = sshll.u32 [#allocation8], 4
      %s62 = int_to_ptr.vmem [resolvable:$true] %s61
      %67 = dma.hbm_to_vmem [thread:$0]  %s5, 4096, %s62, [#allocation9], 256, 256, 16
    $region25: #{tpu_custom_call.1} parent=1 // pred_fallthru
      _
    // Predicated region
    $region26: #{tpu_custom_call.1} parent=1 // pred_check
      _
    $region27: #{tpu_custom_call.1} parent=1 // pred_check_branch
      %69 = sbr.rel (0) target = $region29
    $region28: #{tpu_custom_call.1} parent=1 // pred_region
      _
    $region29: #{tpu_custom_call.1} parent=1 // pred_fallthru
      _
    // Predicated region
    $region30: #{tpu_custom_call.1} parent=1 // pred_check
      _
    $region31: #{tpu_custom_call.1} parent=1 // pred_check_branch
      %71 = sbr.rel (0) target = $region33
    $region32: #{tpu_custom_call.1} parent=1 // pred_region
      %s73 = ssub.s32 4096, 4096
      %74 = vsyncadd [#allocation9], %s73
      %s75 = sshll.u32 [#allocation10], 4
      %s76 = int_to_ptr.vmem [resolvable:$true] %s75
      %81 = dma.hbm_to_vmem [thread:$0]  %s7, 4096, %s76, [#allocation9], 128, 128, 8
    $region33: #{tpu_custom_call.1} parent=1 // pred_fallthru
      _
    // Predicated region
    $region34: #{tpu_custom_call.1} parent=1 // pred_check
      _
    $region35: #{tpu_custom_call.1} parent=1 // pred_check_branch
      %83 = sbr.rel (0) target = $region37
    $region36: #{tpu_custom_call.1} parent=1 // pred_region
      _
    $region37: #{tpu_custom_call.1} parent=1 // pred_fallthru
      _
    // Predicated region
    $region38: #{tpu_custom_call.1} parent=1 // pred_check
      _
    $region39: #{tpu_custom_call.1} parent=1 // pred_check_branch
      %85 = sbr.rel (0) target = $region41
    $region40: #{tpu_custom_call.1} parent=1 // pred_region
      %86 = dma.done [#allocation3], 128
    $region41: #{tpu_custom_call.1} parent=1 // pred_fallthru
      _
    // Predicated region
    $region42: #{tpu_custom_call.1} parent=1 // pred_check
      _
    $region43: #{tpu_custom_call.1} parent=1 // pred_check_branch
      %88 = sbr.rel (0) target = $region45
    $region44: #{tpu_custom_call.1} parent=1 // pred_region
      %89 = dma.done [#allocation6], 512
    $region45: #{tpu_custom_call.1} parent=1 // pred_fallthru
      _
    // Predicated region
    $region46: #{tpu_custom_call.1} parent=1 // pred_check
      _
    $region47: #{tpu_custom_call.1} parent=1 // pred_check_branch
      %91 = sbr.rel (0) target = $region49
    $region48: #{tpu_custom_call.1} parent=1 // pred_region
      %92 = dma.done [#allocation6], 2048
    $region49: #{tpu_custom_call.1} parent=1 // pred_fallthru
      _
    // Predicated region
    $region50: #{tpu_custom_call.1} parent=1 // pred_check
      _
    $region51: #{tpu_custom_call.1} parent=1 // pred_check_branch
      %94 = sbr.rel (0) target = $region53
    $region52: #{tpu_custom_call.1} parent=1 // pred_region
      %95 = dma.done [#allocation9], 4096
    $region53: #{tpu_custom_call.1} parent=1 // pred_fallthru
      _
    // Predicated region
    $region54: #{tpu_custom_call.1} parent=1 // pred_check
      _
    $region55: #{tpu_custom_call.1} parent=1 // pred_check_branch
      %97 = sbr.rel (0) target = $region57
    $region56: #{tpu_custom_call.1} parent=1 // pred_region
      %98 = dma.done [#allocation9], 4096
    $region57: #{tpu_custom_call.1} parent=1 // pred_fallthru
      _
    %v99 = vld [vmem:[#allocation2] sm:$0xff]
    %v100 = vld [vmem:[#allocation5] sm:$0xff]
    %v101 = vld [vmem:[#allocation5 + $0x8] sm:$0xff]
    %v102 = vld [vmem:[#allocation5 + $0x10] sm:$0xff]
    %v103 = vld [vmem:[#allocation5 + $0x18] sm:$0xff]
    %v104 = vld [vmem:[%s2] sm:$0x1]
    %v106 = vlaneseq
    %v107 = vshrl.u32 %v106, 7
    %v108 = vsub.s32 0, %v107
    %v109 = vrot.slane %v104, %v108
    %vm111 = vcmask 261120
    %v113 = vsel %vm111, %v99, 0
    %115 = vmatprep.subr.mxu0 0.0
    %116 = vmatpush1.msra.mxu0 %v100
    %117 = vmatprep.subr.mxu0 0.0
    %118 = vmatpush1.msra.mxu0 %v101
    %119 = vmatprep.subr.mxu0 0.0
    %120 = vmatpush1.msra.mxu0 %v102
    %121 = vmatprep.subr.mxu0 0.0
    %122 = vmatpush1.msra.mxu0 %v103
    %123 = vmatprep.subr.mxu0 0.0
    %124 = vmatpush1.msra.mxu0 0.0
    %125 = vmatprep.subr.mxu0 0.0
    %126 = vmatpush1.msra.mxu0 0.0
    %127 = vmatprep.subr.mxu0 0.0
    %128 = vmatpush1.msra.mxu0 0.0
    %129 = vmatprep.subr.mxu0 0.0
    %130 = vmatpush1.msra.mxu0 0.0
    %131 = vmatprep.subr.mxu0 0.0
    %132 = vmatpush1.msra.mxu0 0.0
    %133 = vmatprep.subr.mxu0 0.0
    %134 = vmatpush1.msra.mxu0 0.0
    %135 = vmatprep.subr.mxu0 0.0
    %136 = vmatpush1.msra.mxu0 0.0
    %137 = vmatprep.subr.mxu0 0.0
    %138 = vmatpush1.msra.mxu0 0.0
    %139 = vmatprep.subr.mxu0 0.0
    %140 = vmatpush1.msra.mxu0 0.0
    %141 = vmatprep.subr.mxu0 0.0
    %142 = vmatpush1.msra.mxu0 0.0
    %143 = vmatprep.subr.mxu0 0.0
    %144 = vmatpush1.msra.mxu0 0.0
    %145 = vmatprep.subr.mxu0 0.0
    %146 = vmatpush1.msra.mxu0 0.0
    %147 = vmatprep.subr.mxu0 0.0
    %148 = vmatpush1.msra.mxu0 0.0
    %149 = vmatprep.subr.mxu0 0.0
    %150 = vmatpush1.msra.mxu0 0.0
    %151 = vmatprep.subr.mxu0 0.0
    %152 = vmatpush1.msra.mxu0 0.0
    %153 = vmatprep.subr.mxu0 0.0
    %154 = vmatpush1.msra.mxu0 0.0
    %155 = vmatprep.subr.mxu0 0.0
    %156 = vmatpush1.msra.mxu0 0.0
    %157 = vmatprep.subr.mxu0 0.0
    %158 = vmatpush1.msra.mxu0 0.0
    %159 = vmatprep.subr.mxu0 0.0
    %160 = vmatpush1.msra.mxu0 0.0
    %161 = vmatprep.subr.mxu0 0.0
    %162 = vmatpush1.msra.mxu0 0.0
    %163 = vmatprep.subr.mxu0 0.0
    %164 = vmatpush1.msra.mxu0 0.0
    %165 = vmatprep.subr.mxu0 0.0
    %166 = vmatpush1.msra.mxu0 0.0
    %167 = vmatprep.subr.mxu0 0.0
    %168 = vmatpush1.msra.mxu0 0.0
    %169 = vmatprep.subr.mxu0 0.0
    %170 = vmatpush1.msra.mxu0 0.0
    %171 = vmatprep.subr.mxu0 0.0
    %172 = vmatpush1.msra.mxu0 0.0
    %173 = vmatprep.subr.mxu0 0.0
    %174 = vmatpush1.msra.mxu0 0.0
    %175 = vmatprep.subr.mxu0 0.0
    %176 = vmatpush1.msra.mxu0 0.0
    %177 = vmatprep.subr.mxu0 0.0
    %178 = vmatpush1.msra.mxu0 0.0
    %179 = vmatprep.mubr.f32.mxu0 0.0
    %180 = vmatmul.mubr.f32.gmra.mrb[0].mxu0 %v113
    %v181 = vpop.f32.mrb[0].mxu0
    %v182 = vadd.f32 %v109, %v181
    %v183 = vpop.f32.mrb[0].mxu0
    %184 = vdwg.mxu0
    %v185 = vsub.f32 0.0, %v182
    %v186 = vmul.f32 %v185, 1.442695
    %v187 = vpow.pop %v186
    %v188 = vadd.f32 %v187, 1.0
    %v189 = vrcp.pop %v188
    %v190 = vld [vmem:[#allocation7] sm:$0xff]
    %v191 = vld [vmem:[#allocation7 + $0x8] sm:$0xff]
    %v192 = vld [vmem:[#allocation7 + $0x10] sm:$0xff]
    %v193 = vld [vmem:[#allocation7 + $0x18] sm:$0xff]
    %v194 = vld [vmem:[#allocation7 + $0x20] sm:$0xff]
    %v195 = vld [vmem:[#allocation7 + $0x28] sm:$0xff]
    %v196 = vld [vmem:[#allocation7 + $0x30] sm:$0xff]
    %v197 = vld [vmem:[#allocation7 + $0x38] sm:$0xff]
    %v198 = vld [vmem:[#allocation7 + $0x40] sm:$0xff]
    %v199 = vld [vmem:[#allocation7 + $0x48] sm:$0xff]
    %v200 = vld [vmem:[#allocation7 + $0x50] sm:$0xff]
    %v201 = vld [vmem:[#allocation7 + $0x58] sm:$0xff]
    %v202 = vld [vmem:[#allocation7 + $0x60] sm:$0xff]
    %v203 = vld [vmem:[#allocation7 + $0x68] sm:$0xff]
    %v204 = vld [vmem:[#allocation7 + $0x70] sm:$0xff]
    %v205 = vld [vmem:[#allocation7 + $0x78] sm:$0xff]
    %v206 = vld [vmem:[%s4] sm:$0x1]
    %v208 = vlaneseq
    %v209 = vshrl.u32 %v208, 7
    %v210 = vsub.s32 0, %v209
    %v211 = vrot.slane %v206, %v210
    %213 = vmatprep.subr.mxu0 0.0
    %214 = vmatpush1.msra.mxu0 %v190
    %215 = vmatprep.subr.mxu0 0.0
    %216 = vmatpush1.msra.mxu0 %v191
    %217 = vmatprep.subr.mxu0 0.0
    %218 = vmatpush1.msra.mxu0 %v192
    %219 = vmatprep.subr.mxu0 0.0
    %220 = vmatpush1.msra.mxu0 %v193
    %221 = vmatprep.subr.mxu0 0.0
    %222 = vmatpush1.msra.mxu0 %v194
    %223 = vmatprep.subr.mxu0 0.0
    %224 = vmatpush1.msra.mxu0 %v195
    %225 = vmatprep.subr.mxu0 0.0
    %226 = vmatpush1.msra.mxu0 %v196
    %227 = vmatprep.subr.mxu0 0.0
    %228 = vmatpush1.msra.mxu0 %v197
    %229 = vmatprep.subr.mxu0 0.0
    %230 = vmatpush1.msra.mxu0 %v198
    %231 = vmatprep.subr.mxu0 0.0
    %232 = vmatpush1.msra.mxu0 %v199
    %233 = vmatprep.subr.mxu0 0.0
    %234 = vmatpush1.msra.mxu0 %v200
    %235 = vmatprep.subr.mxu0 0.0
    %236 = vmatpush1.msra.mxu0 %v201
    %237 = vmatprep.subr.mxu0 0.0
    %238 = vmatpush1.msra.mxu0 %v202
    %239 = vmatprep.subr.mxu0 0.0
    %240 = vmatpush1.msra.mxu0 %v203
    %241 = vmatprep.subr.mxu0 0.0
    %242 = vmatpush1.msra.mxu0 %v204
    %243 = vmatprep.subr.mxu0 0.0
    %244 = vmatpush1.msra.mxu0 %v205
    %245 = vmatprep.subr.mxu0 0.0
    %246 = vmatpush1.msra.mxu0 0.0
    %247 = vmatprep.subr.mxu0 0.0
    %248 = vmatpush1.msra.mxu0 0.0
    %249 = vmatprep.subr.mxu0 0.0
    %250 = vmatpush1.msra.mxu0 0.0
    %251 = vmatprep.subr.mxu0 0.0
    %252 = vmatpush1.msra.mxu0 0.0
    %253 = vmatprep.subr.mxu0 0.0
    %254 = vmatpush1.msra.mxu0 0.0
    %255 = vmatprep.subr.mxu0 0.0
    %256 = vmatpush1.msra.mxu0 0.0
    %257 = vmatprep.subr.mxu0 0.0
    %258 = vmatpush1.msra.mxu0 0.0
    %259 = vmatprep.subr.mxu0 0.0
    %260 = vmatpush1.msra.mxu0 0.0
    %261 = vmatprep.subr.mxu0 0.0
    %262 = vmatpush1.msra.mxu0 0.0
    %263 = vmatprep.subr.mxu0 0.0
    %264 = vmatpush1.msra.mxu0 0.0
    %265 = vmatprep.subr.mxu0 0.0
    %266 = vmatpush1.msra.mxu0 0.0
    %267 = vmatprep.subr.mxu0 0.0
    %268 = vmatpush1.msra.mxu0 0.0
    %269 = vmatprep.subr.mxu0 0.0
    %270 = vmatpush1.msra.mxu0 0.0
    %271 = vmatprep.subr.mxu0 0.0
    %272 = vmatpush1.msra.mxu0 0.0
    %273 = vmatprep.subr.mxu0 0.0
    %274 = vmatpush1.msra.mxu0 0.0
    %275 = vmatprep.subr.mxu0 0.0
    %276 = vmatpush1.msra.mxu0 0.0
    %277 = vmatprep.mubr.f32.mxu0 0.0
    %278 = vmatmul.mubr.f32.gmra.mrb[0].mxu0 %v189
    %v279 = vpop.f32.mrb[0].mxu0
    %v280 = vadd.f32 %v211, %v279
    %v281 = vpop.f32.mrb[0].mxu0
    %282 = vdwg.mxu0
    %v283 = vmax.f32 %v280, 0.0
    %v284 = vld [vmem:[#allocation8] sm:$0xff]
    %v285 = vld [vmem:[#allocation8 + $0x8] sm:$0xff]
    %v286 = vld [vmem:[#allocation8 + $0x10] sm:$0xff]
    %v287 = vld [vmem:[#allocation8 + $0x18] sm:$0xff]
    %v288 = vld [vmem:[#allocation8 + $0x20] sm:$0xff]
    %v289 = vld [vmem:[#allocation8 + $0x28] sm:$0xff]
    %v290 = vld [vmem:[#allocation8 + $0x30] sm:$0xff]
    %v291 = vld [vmem:[#allocation8 + $0x38] sm:$0xff]
    %v292 = vld [vmem:[#allocation8 + $0x40] sm:$0xff]
    %v293 = vld [vmem:[#allocation8 + $0x48] sm:$0xff]
    %v294 = vld [vmem:[#allocation8 + $0x50] sm:$0xff]
    %v295 = vld [vmem:[#allocation8 + $0x58] sm:$0xff]
    %v296 = vld [vmem:[#allocation8 + $0x60] sm:$0xff]
    %v297 = vld [vmem:[#allocation8 + $0x68] sm:$0xff]
    %v298 = vld [vmem:[#allocation8 + $0x70] sm:$0xff]
    %v299 = vld [vmem:[#allocation8 + $0x78] sm:$0xff]
    %v300 = vld [vmem:[#allocation8 + $0x80] sm:$0xff]
    %v301 = vld [vmem:[#allocation8 + $0x88] sm:$0xff]
    %v302 = vld [vmem:[#allocation8 + $0x90] sm:$0xff]
    %v303 = vld [vmem:[#allocation8 + $0x98] sm:$0xff]
    %v304 = vld [vmem:[#allocation8 + $0xa0] sm:$0xff]
    %v305 = vld [vmem:[#allocation8 + $0xa8] sm:$0xff]
    %v306 = vld [vmem:[#allocation8 + $0xb0] sm:$0xff]
    %v307 = vld [vmem:[#allocation8 + $0xb8] sm:$0xff]
    %v308 = vld [vmem:[#allocation8 + $0xc0] sm:$0xff]
    %v309 = vld [vmem:[#allocation8 + $0xc8] sm:$0xff]
    %v310 = vld [vmem:[#allocation8 + $0xd0] sm:$0xff]
    %v311 = vld [vmem:[#allocation8 + $0xd8] sm:$0xff]
    %v312 = vld [vmem:[#allocation8 + $0xe0] sm:$0xff]
    %v313 = vld [vmem:[#allocation8 + $0xe8] sm:$0xff]
    %v314 = vld [vmem:[#allocation8 + $0xf0] sm:$0xff]
    %v315 = vld [vmem:[#allocation8 + $0xf8] sm:$0xff]
    %v316 = vld [vmem:[%s6] sm:$0x3]
    %v318 = vlaneseq
    %v319 = vshrl.u32 %v318, 7
    %v320 = vsub.s32 0, %v319
    %v321 = vrot.slane %v316, %v320
    %v322 = vlaneseq
    %v323 = vshrl.u32 %v322, 7
    %v324 = vsub.s32 1, %v323
    %v325 = vrot.slane %v316, %v324
    %328 = vmatprep.subr.mxu0 %v285
    %329 = vmatpush1.msra.mxu0 %v284
    %330 = vmatprep.subr.mxu0 %v287
    %331 = vmatpush1.msra.mxu0 %v286
    %332 = vmatprep.subr.mxu0 %v289
    %333 = vmatpush1.msra.mxu0 %v288
    %334 = vmatprep.subr.mxu0 %v291
    %335 = vmatpush1.msra.mxu0 %v290
    %336 = vmatprep.subr.mxu0 %v293
    %337 = vmatpush1.msra.mxu0 %v292
    %338 = vmatprep.subr.mxu0 %v295
    %339 = vmatpush1.msra.mxu0 %v294
    %340 = vmatprep.subr.mxu0 %v297
    %341 = vmatpush1.msra.mxu0 %v296
    %342 = vmatprep.subr.mxu0 %v299
    %343 = vmatpush1.msra.mxu0 %v298
    %344 = vmatprep.subr.mxu0 %v301
    %345 = vmatpush1.msra.mxu0 %v300
    %346 = vmatprep.subr.mxu0 %v303
    %347 = vmatpush1.msra.mxu0 %v302
    %348 = vmatprep.subr.mxu0 %v305
    %349 = vmatpush1.msra.mxu0 %v304
    %350 = vmatprep.subr.mxu0 %v307
    %351 = vmatpush1.msra.mxu0 %v306
    %352 = vmatprep.subr.mxu0 %v309
    %353 = vmatpush1.msra.mxu0 %v308
    %354 = vmatprep.subr.mxu0 %v311
    %355 = vmatpush1.msra.mxu0 %v310
    %356 = vmatprep.subr.mxu0 %v313
    %357 = vmatpush1.msra.mxu0 %v312
    %358 = vmatprep.subr.mxu0 %v315
    %359 = vmatpush1.msra.mxu0 %v314
    %360 = vmatprep.subr.mxu0 0.0
    %361 = vmatpush1.msra.mxu0 0.0
    %362 = vmatprep.subr.mxu0 0.0
    %363 = vmatpush1.msra.mxu0 0.0
    %364 = vmatprep.subr.mxu0 0.0
    %365 = vmatpush1.msra.mxu0 0.0
    %366 = vmatprep.subr.mxu0 0.0
    %367 = vmatpush1.msra.mxu0 0.0
    %368 = vmatprep.subr.mxu0 0.0
    %369 = vmatpush1.msra.mxu0 0.0
    %370 = vmatprep.subr.mxu0 0.0
    %371 = vmatpush1.msra.mxu0 0.0
    %372 = vmatprep.subr.mxu0 0.0
    %373 = vmatpush1.msra.mxu0 0.0
    %374 = vmatprep.subr.mxu0 0.0
    %375 = vmatpush1.msra.mxu0 0.0
    %376 = vmatprep.subr.mxu0 0.0
    %377 = vmatpush1.msra.mxu0 0.0
    %378 = vmatprep.subr.mxu0 0.0
    %379 = vmatpush1.msra.mxu0 0.0
    %380 = vmatprep.subr.mxu0 0.0
    %381 = vmatpush1.msra.mxu0 0.0
    %382 = vmatprep.subr.mxu0 0.0
    %383 = vmatpush1.msra.mxu0 0.0
    %384 = vmatprep.subr.mxu0 0.0
    %385 = vmatpush1.msra.mxu0 0.0
    %386 = vmatprep.subr.mxu0 0.0
    %387 = vmatpush1.msra.mxu0 0.0
    %388 = vmatprep.subr.mxu0 0.0
    %389 = vmatpush1.msra.mxu0 0.0
    %390 = vmatprep.subr.mxu0 0.0
    %391 = vmatpush1.msra.mxu0 0.0
    %392 = vmatprep.mubr.f32.mxu0 0.0
    %393 = vmatmul.mubr.f32.gmra.mrb[0].mxu0 %v283
    %v394 = vpop.f32.mrb[0].mxu0
    %v395 = vadd.f32 %v321, %v394
    %v396 = vpop.f32.mrb[0].mxu0
    %v397 = vadd.f32 %v325, %v396
    %398 = vdwg.mxu0
    %v399 = vmax.f32 %v395, 0.0
    %v400 = vmax.f32 %v397, 0.0
    %v401 = vld [vmem:[#allocation10] sm:$0xff]
    %v402 = vld [vmem:[#allocation10 + $0x8] sm:$0xff]
    %v403 = vld [vmem:[#allocation10 + $0x10] sm:$0xff]
    %v404 = vld [vmem:[#allocation10 + $0x18] sm:$0xff]
    %v405 = vld [vmem:[#allocation10 + $0x20] sm:$0xff]
    %v406 = vld [vmem:[#allocation10 + $0x28] sm:$0xff]
    %v407 = vld [vmem:[#allocation10 + $0x30] sm:$0xff]
    %v408 = vld [vmem:[#allocation10 + $0x38] sm:$0xff]
    %v409 = vld [vmem:[#allocation10 + $0x40] sm:$0xff]
    %v410 = vld [vmem:[#allocation10 + $0x48] sm:$0xff]
    %v411 = vld [vmem:[#allocation10 + $0x50] sm:$0xff]
    %v412 = vld [vmem:[#allocation10 + $0x58] sm:$0xff]
    %v413 = vld [vmem:[#allocation10 + $0x60] sm:$0xff]
    %v414 = vld [vmem:[#allocation10 + $0x68] sm:$0xff]
    %v415 = vld [vmem:[#allocation10 + $0x70] sm:$0xff]
    %v416 = vld [vmem:[#allocation10 + $0x78] sm:$0xff]
    %v417 = vld [vmem:[#allocation10 + $0x80] sm:$0xff]
    %v418 = vld [vmem:[#allocation10 + $0x88] sm:$0xff]
    %v419 = vld [vmem:[#allocation10 + $0x90] sm:$0xff]
    %v420 = vld [vmem:[#allocation10 + $0x98] sm:$0xff]
    %v421 = vld [vmem:[#allocation10 + $0xa0] sm:$0xff]
    %v422 = vld [vmem:[#allocation10 + $0xa8] sm:$0xff]
    %v423 = vld [vmem:[#allocation10 + $0xb0] sm:$0xff]
    %v424 = vld [vmem:[#allocation10 + $0xb8] sm:$0xff]
    %v425 = vld [vmem:[#allocation10 + $0xc0] sm:$0xff]
    %v426 = vld [vmem:[#allocation10 + $0xc8] sm:$0xff]
    %v427 = vld [vmem:[#allocation10 + $0xd0] sm:$0xff]
    %v428 = vld [vmem:[#allocation10 + $0xd8] sm:$0xff]
    %v429 = vld [vmem:[#allocation10 + $0xe0] sm:$0xff]
    %v430 = vld [vmem:[#allocation10 + $0xe8] sm:$0xff]
    %v431 = vld [vmem:[#allocation10 + $0xf0] sm:$0xff]
    %v432 = vld [vmem:[#allocation10 + $0xf8] sm:$0xff]
    %v433 = vld [vmem:[%s8] sm:$0x1]
    %v435 = vlaneseq
    %v436 = vshrl.u32 %v435, 7
    %v437 = vsub.s32 0, %v436
    %v438 = vrot.slane %v433, %v437
    %440 = vmatprep.subr.mxu0 0.0
    %441 = vmatpush1.msra.mxu0 %v401
    %442 = vmatprep.subr.mxu0 0.0
    %443 = vmatpush1.msra.mxu0 %v402
    %444 = vmatprep.subr.mxu0 0.0
    %445 = vmatpush1.msra.mxu0 %v403
    %446 = vmatprep.subr.mxu0 0.0
    %447 = vmatpush1.msra.mxu0 %v404
    %448 = vmatprep.subr.mxu0 0.0
    %449 = vmatpush1.msra.mxu0 %v405
    %450 = vmatprep.subr.mxu0 0.0
    %451 = vmatpush1.msra.mxu0 %v406
    %452 = vmatprep.subr.mxu0 0.0
    %453 = vmatpush1.msra.mxu0 %v407
    %454 = vmatprep.subr.mxu0 0.0
    %455 = vmatpush1.msra.mxu0 %v408
    %456 = vmatprep.subr.mxu0 0.0
    %457 = vmatpush1.msra.mxu0 %v409
    %458 = vmatprep.subr.mxu0 0.0
    %459 = vmatpush1.msra.mxu0 %v410
    %460 = vmatprep.subr.mxu0 0.0
    %461 = vmatpush1.msra.mxu0 %v411
    %462 = vmatprep.subr.mxu0 0.0
    %463 = vmatpush1.msra.mxu0 %v412
    %464 = vmatprep.subr.mxu0 0.0
    %465 = vmatpush1.msra.mxu0 %v413
    %466 = vmatprep.subr.mxu0 0.0
    %467 = vmatpush1.msra.mxu0 %v414
    %468 = vmatprep.subr.mxu0 0.0
    %469 = vmatpush1.msra.mxu0 %v415
    %470 = vmatprep.subr.mxu0 0.0
    %471 = vmatpush1.msra.mxu0 %v416
    %472 = vmatprep.subr.mxu0 0.0
    %473 = vmatpush1.msra.mxu0 %v417
    %474 = vmatprep.subr.mxu0 0.0
    %475 = vmatpush1.msra.mxu0 %v418
    %476 = vmatprep.subr.mxu0 0.0
    %477 = vmatpush1.msra.mxu0 %v419
    %478 = vmatprep.subr.mxu0 0.0
    %479 = vmatpush1.msra.mxu0 %v420
    %480 = vmatprep.subr.mxu0 0.0
    %481 = vmatpush1.msra.mxu0 %v421
    %482 = vmatprep.subr.mxu0 0.0
    %483 = vmatpush1.msra.mxu0 %v422
    %484 = vmatprep.subr.mxu0 0.0
    %485 = vmatpush1.msra.mxu0 %v423
    %486 = vmatprep.subr.mxu0 0.0
    %487 = vmatpush1.msra.mxu0 %v424
    %488 = vmatprep.subr.mxu0 0.0
    %489 = vmatpush1.msra.mxu0 %v425
    %490 = vmatprep.subr.mxu0 0.0
    %491 = vmatpush1.msra.mxu0 %v426
    %492 = vmatprep.subr.mxu0 0.0
    %493 = vmatpush1.msra.mxu0 %v427
    %494 = vmatprep.subr.mxu0 0.0
    %495 = vmatpush1.msra.mxu0 %v428
    %496 = vmatprep.subr.mxu0 0.0
    %497 = vmatpush1.msra.mxu0 %v429
    %498 = vmatprep.subr.mxu0 0.0
    %499 = vmatpush1.msra.mxu0 %v430
    %500 = vmatprep.subr.mxu0 0.0
    %501 = vmatpush1.msra.mxu0 %v431
    %502 = vmatprep.subr.mxu0 0.0
    %503 = vmatpush1.msra.mxu0 %v432
    %504 = vmatprep.mubr.f32.mxu0 %v400
    %505 = vmatmul.mubr.f32.gmra.mrb[0].mxu0 %v399
    %v506 = vpop.f32.mrb[0].mxu0
    %v507 = vadd.f32 %v438, %v506
    %v508 = vpop.f32.mrb[0].mxu0
    %509 = vdwg.mxu0
    %v510 = vsub.f32 0.0, %v507
    %v511 = vmul.f32 %v510, 1.442695
    %v512 = vpow.pop %v511
    %v513 = vadd.f32 %v512, 1.0
    %v514 = vrcp.pop %v513
    %515 = vst [vmem:[#allocation11] sm:$0xff] %v514
    // Predicated region
    $region58: #{tpu_custom_call.1} parent=1 // pred_check
      _
    $region59: #{tpu_custom_call.1} parent=1 // pred_check_branch
      %517 = sbr.rel (0) target = $region61
    $region60: #{tpu_custom_call.1} parent=1 // pred_region
      %s519 = ssub.s32 128, 128
      %520 = vsyncadd [#allocation4], %s519
      %s522 = sshll.u32 [#allocation11], 4
      %s523 = int_to_ptr.vmem [resolvable:$true] %s522
      %525 = dma.vmem_to_hbm [thread:$0]  %s523, 128, %s9, [#allocation4]
    $region61: #{tpu_custom_call.1} parent=1 // pred_fallthru
      _
    // Predicated region
    $region62: #{tpu_custom_call.1} parent=1 // pred_check
      _
    $region63: #{tpu_custom_call.1} parent=1 // pred_check_branch
      %527 = sbr.rel (0) target = $region65
    $region64: #{tpu_custom_call.1} parent=1 // pred_region
      %528 = dma.done [#allocation4], 128
    $region65: #{tpu_custom_call.1} parent=1 // pred_fallthru
      _
    %529 = vsyncpa [#allocation3], 1
    %530 = vsyncpa [#allocation6], 1
    %531 = vsyncpa [#allocation9], 1
    %532 = vsyncpa [#allocation4], 1

</llo_original>
